<compile_context>
chip_gen: v7x
topology: tpu7x:2x2x1
jax: 0.10.0
libtpu: 0.0.40
codegen_flags: <defaults>
</compile_context>

<pallas_src>
import functools
import math
from typing import NamedTuple

import jax
import jax.numpy as jnp
from jax.experimental import pallas as pl
from jax.experimental.pallas import tpu as pltpu

LANE = 128
TM_MAX = 1024
VMEM_LIMIT = 48 * 1024 * 1024  # <= v7x's 64 MiB physical VMEM; fine on v5e/v6e


def _round_up(x, m):
    return (x + m - 1) // m * m


def _cdiv(a, b):
    return -(-a // b)


def _tile_m(M):
    """Row-tile size & padded M.  Avoids pathological padding and guarantees
    a grid of >= 2 steps (both v7x TensorCores) whenever M allows it."""
    m8 = _round_up(max(M, 1), 8)
    n_tiles = max(_cdiv(m8, TM_MAX), 1)
    if n_tiles == 1 and m8 >= 16:
        n_tiles = 2
    tm = _round_up(_cdiv(m8, n_tiles), 8)
    m_pad = tm * _cdiv(m8, tm)
    return tm, m_pad


class NetMeta(NamedTuple):
    num_in: int
    hidden: int
    num_out: int
    num_layers: int
    o_pad: int
    y_pad: int
    ka_pad: int


# --------------------------------------------------------------------------
# Kernels
# --------------------------------------------------------------------------
def _gabor_from_aug(x_aug, wmu, o_pad):
    """One Gabor filter from the augmented LHS.

    x_aug: (TM, Ka)  rows = [x, ||x||^2, 1, 0...]
    wmu:   (Ka, 2*O_pad)  cols [:O_pad] -> z = Wx+b, cols [O_pad:] -> expo
    """
    y = jnp.dot(x_aug, wmu, preferred_element_type=jnp.float32)
    # slices are at a 128-lane boundary -> free
    return jnp.sin(y[:, :o_pad]) * jnp.exp(y[:, o_pad:])


def gabor_layer_kernel(x_ref, wmu_ref, o_ref, *, o_pad):
    o_ref[...] = _gabor_from_aug(x_ref[...], wmu_ref[...], o_pad)


def gabor_net_kernel(x_ref, wmu_ref, wl_ref, bl_ref, wo_ref, bo_ref, y_ref,
                     *, num_layers, o_pad):
    """Fused GaborNet: all filters / gates / output linear in one kernel."""
    x_aug = x_ref[...]                                        # (TM, Ka)
    out = _gabor_from_aug(x_aug, wmu_ref[0], o_pad)           # filters[0](x)
    for i in range(num_layers):                               # small static unroll
        gab = _gabor_from_aug(x_aug, wmu_ref[i + 1], o_pad)
        lin = jnp.dot(out, wl_ref[i],
                      preferred_element_type=jnp.float32) + bl_ref[i:i + 1, :]
        out = gab * lin
    z = jnp.dot(out, wo_ref[...],
                preferred_element_type=jnp.float32) + bo_ref[0:1, :]
    # tanh-based sigmoid: single EUP op, no exp+divide
    y_ref[...] = 0.5 * jnp.tanh(0.5 * z) + 0.5


# --------------------------------------------------------------------------
# Parameter packing (hoisted out of the per-forward path)
# --------------------------------------------------------------------------
def _pack_filter(weight, bias, mu, gamma, ka_pad, o_pad):
    """Pack one GaborLayer into the augmented-matmul RHS (Ka, 2*O_pad)."""
    O, K = weight.shape
    mu2d = mu.reshape(O, K).astype(jnp.float32)
    g = gamma.astype(jnp.float32)
    w = weight.astype(jnp.float32)
    b = bias.astype(jnp.float32)

    wmu = jnp.zeros((ka_pad, 2 * o_pad), jnp.float32)
    # z = W x + b          (columns [:O_pad])
    wmu = wmu.at[:K, :O].set(w.T)
    wmu = wmu.at[K + 1, :O].set(b)                              # "1" row -> bias
    # expo = -0.5*gamma*||x||^2 + x.(gamma*mu) - 0.5*gamma*||mu||^2
    wmu = wmu.at[:K, o_pad:o_pad + O].set((mu2d * g[:, None]).T)
    wmu = wmu.at[K, o_pad:o_pad + O].set(-0.5 * g)              # "xx" row
    wmu = wmu.at[K + 1, o_pad:o_pad + O].set(
        -0.5 * g * jnp.sum(mu2d * mu2d, axis=-1))
    return wmu


def pack_gabor_net_params(params):
    hidden, num_in = params["filters"][0][0].shape
    num_out = params["out_w"].shape[0]
    num_layers = len(params["linears"])

    o_pad = _round_up(hidden, LANE)
    y_pad = _round_up(num_out, LANE)
    ka_pad = _round_up(num_in + 2, 8)

    wmu = jnp.stack([_pack_filter(w, b, mu, g, ka_pad, o_pad)
                     for (w, b, mu, g) in params["filters"]])   # (L+1, Ka, 2*O_pad)

    if num_layers > 0:
        wl = jnp.zeros((num_layers, o_pad, o_pad), jnp.float32)
        bl = jnp.zeros((_round_up(num_layers, 8), o_pad), jnp.float32)
        for i, (w, b) in enumerate(params["linears"]):
            oo, oi = w.shape
            # Module semantics require num_hidden_in == num_hidden_out.
            assert oi == hidden and oo == hidden, \
                "GaborNet recurrence requires num_hidden_in == num_hidden_out"
            wl = wl.at[i, :oi, :oo].set(w.T.astype(jnp.float32))
            bl = bl.at[i, :oo].set(b.astype(jnp.float32))
    else:  # degenerate dummies, never read by the kernel
        wl = jnp.zeros((1, o_pad, o_pad), jnp.float32)
        bl = jnp.zeros((8, o_pad), jnp.float32)

    wo, bo = params["out_w"], params["out_b"]
    oo, oi = wo.shape
    assert oi == hidden
    wo_t = jnp.zeros((o_pad, y_pad), jnp.float32).at[:oi, :oo].set(
        wo.T.astype(jnp.float32))
    bo_p = jnp.zeros((8, y_pad), jnp.float32).at[0, :oo].set(
        bo.astype(jnp.float32))

    packed = {"wmu": wmu, "wl": wl, "bl": bl, "wo": wo_t, "bo": bo_p}
    meta = NetMeta(num_in=num_in, hidden=hidden, num_out=num_out,
                   num_layers=num_layers, o_pad=o_pad, y_pad=y_pad,
                   ka_pad=ka_pad)
    return packed, meta


def _augment_x(x_flat, K, m_pad, ka_pad):
    """Augmented LHS rows: [x, ||x||^2, 1, 0...], zero-padded to (m_pad, Ka)."""
    M = x_flat.shape[0]
    x_aug = jnp.zeros((m_pad, ka_pad), jnp.float32)
    x_aug = x_aug.at[:M, :K].set(x_flat)
    x_aug = x_aug.at[:M, K].set(jnp.sum(x_flat * x_flat, axis=-1))
    x_aug = x_aug.at[:M, K + 1].set(1.0)
    return x_aug


# --------------------------------------------------------------------------
# pallas_call wrappers
# --------------------------------------------------------------------------
def _compiler_params():
    return pltpu.CompilerParams(
        dimension_semantics=("parallel",),
        vmem_limit_bytes=VMEM_LIMIT,
    )


def _call_gabor_net(x_aug, packed, meta, tm, m_pad):
    ka, o_pad, y_pad, L = meta.ka_pad, meta.o_pad, meta.y_pad, meta.num_layers
    lw = packed["wl"].shape[0]
    lb = packed["bl"].shape[0]
    kernel = functools.partial(gabor_net_kernel, num_layers=L, o_pad=o_pad)

    flops_per_row = (2 * ka * 2 * o_pad * (L + 1)      # filter matmuls
                     + 2 * o_pad * o_pad * L           # gate matmuls
                     + 2 * o_pad * y_pad               # output matmul
                     + 4 * o_pad * L + 3 * y_pad)      # epilogue mul/add
    weight_bytes = 4 * (packed["wmu"].size + packed["wl"].size
                        + packed["bl"].size + packed["wo"].size
                        + packed["bo"].size)
    cost = pl.CostEstimate(
        flops=m_pad * flops_per_row,
        transcendentals=m_pad * (2 * o_pad * (L + 1) + y_pad),
        bytes_accessed=4 * (m_pad * ka + m_pad * y_pad) + weight_bytes,
    )

    return pl.pallas_call(
        kernel,
        out_shape=jax.ShapeDtypeStruct((m_pad, y_pad), jnp.float32),
        grid=(m_pad // tm,),
        in_specs=[
            pl.BlockSpec((tm, ka), lambda i: (i, 0)),                  # x rows (streamed)
            pl.BlockSpec((L + 1, ka, 2 * o_pad), lambda i: (0, 0, 0)),  # resident filters
            pl.BlockSpec((lw, o_pad, o_pad), lambda i: (0, 0, 0)),     # resident gates W^T
            pl.BlockSpec((lb, o_pad), lambda i: (0, 0)),               # resident gate biases
            pl.BlockSpec((o_pad, y_pad), lambda i: (0, 0)),            # resident out W^T
            pl.BlockSpec((8, y_pad), lambda i: (0, 0)),                # resident out bias
        ],
        out_specs=pl.BlockSpec((tm, y_pad), lambda i: (i, 0)),
        compiler_params=_compiler_params(),
        cost_estimate=cost,
    )(x_aug, packed["wmu"], packed["wl"], packed["bl"], packed["wo"],
      packed["bo"])


@functools.partial(jax.jit, static_argnames=("meta",))
def _gabor_net_forward_flat(x_flat, packed, meta):
    M = x_flat.shape[0]
    tm, m_pad = _tile_m(M)
    x_aug = _augment_x(x_flat, meta.num_in, m_pad, meta.ka_pad)
    y = _call_gabor_net(x_aug, packed, meta, tm, m_pad)
    return y[:M, :meta.num_out]


def gabor_net_forward(x, packed, meta):
    """Full GaborNet forward for x of shape (B, D) or (B, N, D)."""
    x_flat = x.reshape(-1, meta.num_in).astype(jnp.float32)
    y = _gabor_net_forward_flat(x_flat, packed, meta)
    return y.reshape(*x.shape[:-1], meta.num_out)


# Standalone GaborLayer (same augmented-matmul kernel, single filter) --------
@functools.partial(jax.jit, static_argnames=("dims",))
def _gabor_layer_forward_flat(x_flat, wmu, dims):
    K, O, ka_pad, o_pad = dims
    M = x_flat.shape[0]
    tm, m_pad = _tile_m(M)
    x_aug = _augment_x(x_flat, K, m_pad, ka_pad)
    out = pl.pallas_call(
        functools.partial(gabor_layer_kernel, o_pad=o_pad),
        out_shape=jax.ShapeDtypeStruct((m_pad, o_pad), jnp.float32),
        grid=(m_pad // tm,),
        in_specs=[
            pl.BlockSpec((tm, ka_pad), lambda i: (i, 0)),
            pl.BlockSpec((ka_pad, 2 * o_pad), lambda i: (0, 0)),
        ],
        out_specs=pl.BlockSpec((tm, o_pad), lambda i: (i, 0)),
        compiler_params=_compiler_params(),
    )(x_aug, wmu)
    return out[:M, :O]


def gabor_layer_forward(x, weight, bias, mu, gamma):
    O, K = weight.shape
    o_pad = _round_up(O, LANE)
    ka_pad = _round_up(K + 2, 8)
    wmu = _pack_filter(weight, bias, mu, gamma, ka_pad, o_pad)
    x_flat = x.reshape(-1, K).astype(jnp.float32)
    y = _gabor_layer_forward_flat(x_flat, wmu, (K, O, ka_pad, o_pad))
    return y.reshape(*x.shape[:-1], O)


# --------------------------------------------------------------------------
# Parameter init (mirrors the PyTorch __init__) and pure-JAX references
# --------------------------------------------------------------------------
def init_gabor_params(key, in_features, out_features, weight_scale, alpha):
    k_w, k_b, k_mu, k_g = jax.random.split(key, 4)
    bound = 1.0 / math.sqrt(in_features)
    weight = jax.random.uniform(k_w, (out_features, in_features),
                                minval=-bound, maxval=bound, dtype=jnp.float32)
    gamma = jax.random.gamma(k_g, alpha, (out_features,), dtype=jnp.float32)
    weight = weight * (weight_scale * jnp.sqrt(gamma)[:, None])
    bias = jax.random.uniform(k_b, (out_features,), minval=-math.pi,
                              maxval=math.pi, dtype=jnp.float32)
    mu = 2.0 * jax.random.uniform(
        k_mu, (1, 1, out_features, in_features), dtype=jnp.float32) - 1.0
    return weight, bias, mu, gamma


def init_linear(key, in_f, out_f):
    k_w, k_b = jax.random.split(key)
    bound = 1.0 / math.sqrt(in_f)
    w = jax.random.uniform(k_w, (out_f, in_f), minval=-bound, maxval=bound,
                           dtype=jnp.float32)
    b = jax.random.uniform(k_b, (out_f,), minval=-bound, maxval=bound,
                           dtype=jnp.float32)
    return w, b


def init_gabor_net(key, num_in, num_hidden_in, num_hidden_out, num_out,
                   num_layers, input_scale, alpha):
    keys = jax.random.split(key, 2 * num_layers + 2)
    filters = [
        init_gabor_params(keys[i], num_in, num_hidden_out,
                          input_scale / math.sqrt(num_layers + 1),
                          alpha / (num_layers + 1))
        for i in range(num_layers + 1)
    ]
    linears = [init_linear(keys[num_layers + 1 + i], num_hidden_in, num_hidden_out)
               for i in range(num_layers)]
    out_w, out_b = init_linear(keys[2 * num_layers + 1], num_hidden_in, num_out)
    return {"filters": filters, "linears": linears, "out_w": out_w, "out_b": out_b}


def gabor_layer_reference(x, weight, bias, mu, gamma):
    O, K = weight.shape
    mu2 = mu.reshape(O, K)
    if x.ndim == 2:
        diff = x[:, None, :] - mu2[None, :, :]
    else:
        diff = x[:, :, None, :] - mu2[None, None, :, :]
    D = jnp.sum(diff * diff, axis=-1)
    lin = jnp.einsum("...d,od->...o", x, weight, precision="highest") + bias
    return jnp.sin(lin) * jnp.exp(-0.5 * D * gamma)


def gabor_net_reference(x, params):
    out = gabor_layer_reference(x, *params["filters"][0])
    for i in range(1, len(params["filters"])):
        wl, bl = params["linears"][i - 1]
        lin = jnp.einsum("...h,oh->...o", out, wl, precision="highest") + bl
        out = gabor_layer_reference(x, *params["filters"][i]) * lin
    y = jnp.einsum("...h,oh->...o", out, params["out_w"],
                   precision="highest") + params["out_b"]
    return jax.nn.sigmoid(y)


# --------------------------------------------------------------------------
if __name__ == "__main__":
    key = jax.random.PRNGKey(0)
    k_layer, k_net, k_x = jax.random.split(key, 3)

    # Small coordinate-style inputs (GaborNet is an implicit-field network).
    batch, seq = 2, 16
    num_in, num_hidden, num_out = 8, 64, 4
    num_layers = 2
    input_scale, alpha = 2.0, 3.0

    x = jax.random.uniform(k_x, (batch, seq, num_in),
                           minval=-1.0, maxval=1.0, dtype=jnp.float32)

    # --- standalone GaborLayer check -------------------------------------
    w, b, mu, g = init_gabor_params(
        k_layer, num_in, num_hidden,
        input_scale / math.sqrt(num_layers + 1), alpha / (num_layers + 1))
    layer_out = jax.block_until_ready(gabor_layer_forward(x, w, b, mu, g))
    layer_ref = gabor_layer_reference(x, w, b, mu, g)
    assert layer_out.shape == (batch, seq, num_hidden)
    assert jnp.allclose(layer_out, layer_ref, atol=1e-3, rtol=1e-3), \
        "GaborLayer mismatch vs reference"

    # --- full fused GaborNet check ----------------------------------------
    params = init_gabor_net(k_net, num_in, num_hidden, num_hidden, num_out,
                            num_layers, input_scale, alpha)
    packed, meta = pack_gabor_net_params(params)   # packed once, reused per call
    net_out = jax.block_until_ready(gabor_net_forward(x, packed, meta))
    net_ref = gabor_net_reference(x, params)
    assert net_out.shape == (batch, seq, num_out)
    assert jnp.allclose(net_out, net_ref, atol=1e-3, rtol=1e-3), \
        "GaborNet mismatch vs reference"

    print("KERNEL_OK")
</pallas_src>

<mosaic_0001>
module attributes {stable_mosaic.version = 11 : i64} {
  func.func @gabor_layer_kernel(%arg0: i32, %arg1: memref<16x16xf32, #tpu.memory_space<vmem>>, %arg2: memref<16x256xf32, #tpu.memory_space<vmem>>, %arg3: memref<16x128xf32, #tpu.memory_space<vmem>>) attributes {dimension_semantics = [#tpu.dimension_semantics<parallel>], iteration_bounds = array<i64: 2>, scalar_prefetch = 0 : i64, scratch_operands = 0 : i64, tpu.core_type = #tpu.core_type<tc>, window_params = [{transform_indices = @transform_0, window_bounds = array<i64: 16, 16>}, {pipeline_mode = #tpu.pipeline_mode<synchronous>, transform_indices = @transform_1, window_bounds = array<i64: 16, 256>}, {transform_indices = @transform_2, window_bounds = array<i64: 16, 128>}]} {
    %c0 = arith.constant 0 : index
    %c0_0 = arith.constant 0 : index
    %0 = vector.load %arg1[%c0, %c0_0] : memref<16x16xf32, #tpu.memory_space<vmem>>, vector<16x16xf32>
    %c0_1 = arith.constant 0 : index
    %c0_2 = arith.constant 0 : index
    %1 = vector.load %arg2[%c0_1, %c0_2] : memref<16x256xf32, #tpu.memory_space<vmem>>, vector<16x256xf32>
    %cst = arith.constant dense<0.000000e+00> : vector<16x256xf32>
    %2 = tpu.matmul %0, %1, %cst {dimension_numbers = #tpu.dot_dimension_numbers<[1], [0], [0], [1], [0, 0, 1, 1], [], []>} : vector<16x16xf32>, vector<16x256xf32>, vector<16x256xf32> -> vector<16x256xf32>
    %3 = vector.extract_strided_slice %2 {offsets = [0, 0], sizes = [16, 128], strides = [1, 1]} : vector<16x256xf32> to vector<16x128xf32>
    %4 = math.sin %3 : vector<16x128xf32>
    %5 = vector.extract_strided_slice %2 {offsets = [0, 128], sizes = [16, 128], strides = [1, 1]} : vector<16x256xf32> to vector<16x128xf32>
    %6 = math.exp %5 : vector<16x128xf32>
    %7 = arith.mulf %4, %6 : vector<16x128xf32>
    %c0_3 = arith.constant 0 : index
    %c0_4 = arith.constant 0 : index
    %8 = vector.load %arg3[%c0_3, %c0_4] : memref<16x128xf32, #tpu.memory_space<vmem>>, vector<16x128xf32>
    tpu.vector_store %arg3[%c0_3, %c0_4], %7 {strides = array<i32>} : memref<16x128xf32, #tpu.memory_space<vmem>>, vector<16x128xf32>,
    return
  }
  func.func @transform_0(%arg0: i32) -> (i32, i32) {
    %c0_i32 = arith.constant 0 : i32
    %c0_i32_0 = arith.constant 0 : i32
    return %arg0, %c0_i32 : i32, i32
  }
  func.func @transform_1(%arg0: i32) -> (i32, i32) {
    %c0_i32 = arith.constant 0 : i32
    %c0_i32_0 = arith.constant 0 : i32
    %c0_i32_1 = arith.constant 0 : i32
    return %c0_i32, %c0_i32_0 : i32, i32
  }
  func.func @transform_2(%arg0: i32) -> (i32, i32) {
    %c0_i32 = arith.constant 0 : i32
    %c0_i32_0 = arith.constant 0 : i32
    return %arg0, %c0_i32 : i32, i32
  }
}

</mosaic_0001>

<llo_original>
// kernel: _gabor_layer_forward_flat.1
$region0: #{_gabor_layer_forward_flat.1}
  #allocation0 [shape = 'u32[]', space=smem, size = 0x4, offset = 0x4, fixed_abs, tag = 'smem constant byte address 0x4 - core index']
  #allocation1 [shape = 'u32[144,128]{1,0:T(1,128)}', space=vmem, size = 0x12000, scoped, tag = 'internal scratch']
  %s0 = inlined_call_operand.vmem [shape: f32[32,16], index: 0, kind: input, shape index: {}]
  %s1 = inlined_call_operand.vmem [shape: f32[16,256], index: 1, kind: input, shape index: {}]
  %s2 = inlined_call_operand.hbm [shape: f32[32,128], index: 2, kind: output, shape index: {}]
  %s3 = sld [smem:[#allocation0]]
  $region41: #{_gabor_layer_forward_flat.1} parent=0
    _
  %s5 = ssub.s32 1, %s3
  %s6 = scalar_select 0, %s5, %s3
  $region1: #{_gabor_layer_forward_flat.1} parent=0
    #allocation2 [shape = 'u8[16384]{0}', space=vmem, size = 0x4000, scoped, tag = 'output window, operand 0']
    #allocation3 [shape = 's32[2]{0}', space=sflag, size = 0x8, scoped, tag = 'scoped memory for _gabor_layer_forward_flat.1']
    %7 = vsyncpa [#allocation3], 0
    %s8 = scalar_lea.sflag [#allocation3], 1
    %9 = vsyncpa %s8, 0
    loop: start=0, step=1, limit=4
    $region2: #{_gabor_layer_forward_flat.1} parent=1 // loop_pre_header
      _
    $region3: #{_gabor_layer_forward_flat.1} parent=1 // loop_header
      %s11 = sphi 0, %s15
      %p12 = scmp.ge.s32.totalorder %s11, 4
      %s21 = sphi 0, %s23
      %s24 = sphi 0, %s21
      %s25 = sphi 0, %s24
      %s41 = sphi 0, %s25
      %s45 = sphi 0, %s45
      %s47 = sphi 0, %s45
      %s48 = sphi 0, %s47
      %s62 = sphi 0, %s48
      %s68 = sphi 0, %s70
      %s71 = sphi 0, %s68
      %s72 = sphi 0, %s71
      %s88 = sphi 0, %s72
    $region4: #{_gabor_layer_forward_flat.1} parent=1 // loop_header_branch
      %14 = sbr.rel (%p12) target = $region8
    $region5: #{_gabor_layer_forward_flat.1} parent=1 // loop_body
      %s16 = ssub.s32 %s11, 1
      %s17 = ssub.s32 %s11, 2
      %s18 = sadd.s32 %s11, 1
      %s19 = ssub.s32 %s11, %s18
      %p20 = scmp.eq.s32.totalorder %s19, 0
      %s22 = sadd.s32 %s21, 1
      %s23 = scalar_select %p20, %s21, %s22
      %p26 = pneg %p20
      %p27 = scmp.eq.s32.totalorder %s11, 1
      %p28 = por %p26, %p27
      %p29 = scmp.ne.s32.totalorder %s21, %s24
      %p30 = scmp.eq.s32.totalorder %s11, 0
      %p31 = por %p29, %p30
      %p32 = scmp.ne.s32.totalorder %s21, %s24
      %p33 = scmp.eq.s32.totalorder %s16, 1
      %p34 = por %p32, %p33
      %p35 = scmp.ne.s32.totalorder %s24, %s25
      %p36 = scmp.eq.s32.totalorder %s16, 0
      %p37 = por %p35, %p36
      %p38 = scmp.ne.s32.totalorder %s24, %s25
      %p39 = scmp.eq.s32.totalorder %s17, 1
      %p40 = por %p38, %p39
      %p42 = scmp.ne.s32.totalorder %s25, %s41
      %p43 = scmp.eq.s32.totalorder %s17, 0
      %p44 = por %p42, %p43
      %s46 = sadd.s32 %s45, 1
      %p49 = scmp.eq.s32.totalorder %s11, 1
      %p50 = scmp.ne.s32.totalorder %s45, %s47
      %p51 = scmp.eq.s32.totalorder %s11, 0
      %p52 = por %p50, %p51
      %p53 = scmp.ne.s32.totalorder %s45, %s47
      %p54 = scmp.eq.s32.totalorder %s16, 1
      %p55 = por %p53, %p54
      %p56 = scmp.ne.s32.totalorder %s47, %s48
      %p57 = scmp.eq.s32.totalorder %s16, 0
      %p58 = por %p56, %p57
      %p59 = scmp.ne.s32.totalorder %s47, %s48
      %p60 = scmp.eq.s32.totalorder %s17, 1
      %p61 = por %p59, %p60
      %p63 = scmp.ne.s32.totalorder %s48, %s62
      %p64 = scmp.eq.s32.totalorder %s17, 0
      %p65 = por %p63, %p64
      %s66 = ssub.s32 %s11, %s18
      %p67 = scmp.eq.s32.totalorder %s66, 0
      %s69 = sadd.s32 %s68, 1
      %s70 = scalar_select %p67, %s68, %s69
      %p73 = pneg %p67
      %p74 = scmp.eq.s32.totalorder %s11, 1
      %p75 = por %p73, %p74
      %p76 = scmp.ne.s32.totalorder %s68, %s71
      %p77 = scmp.eq.s32.totalorder %s11, 0
      %p78 = por %p76, %p77
      %p79 = scmp.ne.s32.totalorder %s68, %s71
      %p80 = scmp.eq.s32.totalorder %s16, 1
      %p81 = por %p79, %p80
      %p82 = scmp.ne.s32.totalorder %s71, %s72
      %p83 = scmp.eq.s32.totalorder %s16, 0
      %p84 = por %p82, %p83
      %p85 = scmp.ne.s32.totalorder %s71, %s72
      %p86 = scmp.eq.s32.totalorder %s17, 1
      %p87 = por %p85, %p86
      %p89 = scmp.ne.s32.totalorder %s72, %s88
      %p90 = scmp.eq.s32.totalorder %s17, 0
      %p91 = por %p89, %p90
      %p92 = scmp.le.s32.totalorder 1, %s11
      %p93 = scmp.lt.s32.totalorder %s11, 3
      %p94 = pnand %p92, %p93
      %p95 = pneg %p94
      // Predicated region
      $region9: #{_gabor_layer_forward_flat.1} parent=5 // pred_check
        _
      $region10: #{_gabor_layer_forward_flat.1} parent=5 // pred_check_branch
        %97 = sbr.rel (%p94) target = $region12
      $region11: #{_gabor_layer_forward_flat.1} parent=5 // pred_region
        %s98 = ssub.s32 %s11, 1
        // Predicated region
        $region13: #{_gabor_layer_forward_flat.1} parent=11 // pred_check
          %p99 = pneg %p58
        $region14: #{_gabor_layer_forward_flat.1} parent=11 // pred_check_branch
          %101 = sbr.rel (%p99) target = $region16
        $region15: #{_gabor_layer_forward_flat.1} parent=11 // pred_region
          _
        $region16: #{_gabor_layer_forward_flat.1} parent=11 // pred_fallthru
          _
      $region12: #{_gabor_layer_forward_flat.1} parent=5 // pred_fallthru
        _
      %p102 = scmp.lt.s32.totalorder %s11, 2
      // Predicated region
      $region17: #{_gabor_layer_forward_flat.1} parent=5 // pred_check
        %p103 = pneg %p102
      $region18: #{_gabor_layer_forward_flat.1} parent=5 // pred_check_branch
        %105 = sbr.rel (%p103) target = $region20
      $region19: #{_gabor_layer_forward_flat.1} parent=5 // pred_region
        // Predicated region
        $region21: #{_gabor_layer_forward_flat.1} parent=19 // pred_check
          %p106 = pneg %p31
        $region22: #{_gabor_layer_forward_flat.1} parent=19 // pred_check_branch
          %108 = sbr.rel (%p106) target = $region24
        $region23: #{_gabor_layer_forward_flat.1} parent=19 // pred_region
          %s109 = smul.u32 2, %s11
          %p110 = scmp.lt.s32.totalorder %s109, 3
          %s111 = scalar_select %p110, %s109, 3
          %s112 = smul.addr %s111, 8
          %s113 = scalar_lea.vmem %s0, %s112
          %s114 = smul.u32 2, %s11
        $region24: #{_gabor_layer_forward_flat.1} parent=19 // pred_fallthru
          _
      $region20: #{_gabor_layer_forward_flat.1} parent=5 // pred_fallthru
        _
      %p115 = scmp.le.s32.totalorder 1, %s11
      %p116 = scmp.lt.s32.totalorder %s11, 3
      %p117 = pnand %p115, %p116
      %p118 = pneg %p117
      // Predicated region
      $region25: #{_gabor_layer_forward_flat.1} parent=5 // pred_check
        _
      $region26: #{_gabor_layer_forward_flat.1} parent=5 // pred_check_branch
        %120 = sbr.rel (%p117) target = $region28
      $region27: #{_gabor_layer_forward_flat.1} parent=5 // pred_region
        %s121 = ssub.s32 %s11, 1
        %s122 = smul.u32 2, %s16
        %p123 = scmp.lt.s32.totalorder %s122, 3
        %s124 = scalar_select %p123, %s122, 3
        %s125 = smul.addr %s124, 8
        %s126 = scalar_lea.vmem %s0, %s125
        %p127 = pneg %p37
        %p128 = pneg %p34
        %p129 = pneg %p58
        %p130 = pneg %p55
        %p131 = pneg %p84
        %p132 = pneg %p81
        %s133 = sand.u32 %s71, 1
        %s134 = scalar_lea.sflag [#allocation3], %s133
        %s135 = sand.u32 %s71, 1
        %s136 = smul.addr %s135, 16
        %s137 = scalar_lea.vmem [#allocation2], %s136
        %s138 = smul.u32 2, %s16
        %p139 = scmp.lt.s32.totalorder %s138, 3
        %s140 = scalar_select %p139, %s138, 3
        %s141 = smul.addr %s140, 8
        %s142 = scalar_lea.vmem %s0, %s141
        %s143 = smul.u32 2, %s16
        %s144 = smul.u32 2, %s16
        %v145 = vld [vmem:[%s142] sm:$0xff]
        %v146 = vld [vmem:[%s142 + $0x8] sm:$0xff]
        %v147 = vld [vmem:[%s1] sm:$0xff]
        %v148 = vld [vmem:[%s1 + $0x8] sm:$0xff]
        %v149 = vld [vmem:[%s1 + $0x10] sm:$0xff]
        %v150 = vld [vmem:[%s1 + $0x18] sm:$0xff]
        %vm151 = vcmask 130048
        %v153 = vsel %vm151, %v145, 0
        %v156 = vsel %vm151, %v146, 0
        %158 = vmatprep.subr.mxu0 %v148
        %159 = vmatpush1.msra.mxu0 %v147
        %160 = vmatprep.subr.mxu0 %v150
        %161 = vmatpush1.msra.mxu0 %v149
        %162 = vmatprep.subr.mxu0 0.0
        %163 = vmatpush1.msra.mxu0 0.0
        %164 = vmatprep.subr.mxu0 0.0
        %165 = vmatpush1.msra.mxu0 0.0
        %166 = vmatprep.subr.mxu0 0.0
        %167 = vmatpush1.msra.mxu0 0.0
        %168 = vmatprep.subr.mxu0 0.0
        %169 = vmatpush1.msra.mxu0 0.0
        %170 = vmatprep.subr.mxu0 0.0
        %171 = vmatpush1.msra.mxu0 0.0
        %172 = vmatprep.subr.mxu0 0.0
        %173 = vmatpush1.msra.mxu0 0.0
        %174 = vmatprep.subr.mxu0 0.0
        %175 = vmatpush1.msra.mxu0 0.0
        %176 = vmatprep.subr.mxu0 0.0
        %177 = vmatpush1.msra.mxu0 0.0
        %178 = vmatprep.subr.mxu0 0.0
        %179 = vmatpush1.msra.mxu0 0.0
        %180 = vmatprep.subr.mxu0 0.0
        %181 = vmatpush1.msra.mxu0 0.0
        %182 = vmatprep.subr.mxu0 0.0
        %183 = vmatpush1.msra.mxu0 0.0
        %184 = vmatprep.subr.mxu0 0.0
        %185 = vmatpush1.msra.mxu0 0.0
        %186 = vmatprep.subr.mxu0 0.0
        %187 = vmatpush1.msra.mxu0 0.0
        %188 = vmatprep.subr.mxu0 0.0
        %189 = vmatpush1.msra.mxu0 0.0
        %190 = vmatprep.subr.mxu0 0.0
        %191 = vmatpush1.msra.mxu0 0.0
        %192 = vmatprep.subr.mxu0 0.0
        %193 = vmatpush1.msra.mxu0 0.0
        %194 = vmatprep.subr.mxu0 0.0
        %195 = vmatpush1.msra.mxu0 0.0
        %196 = vmatprep.subr.mxu0 0.0
        %197 = vmatpush1.msra.mxu0 0.0
        %198 = vmatprep.subr.mxu0 0.0
        %199 = vmatpush1.msra.mxu0 0.0
        %200 = vmatprep.subr.mxu0 0.0
        %201 = vmatpush1.msra.mxu0 0.0
        %202 = vmatprep.subr.mxu0 0.0
        %203 = vmatpush1.msra.mxu0 0.0
        %204 = vmatprep.subr.mxu0 0.0
        %205 = vmatpush1.msra.mxu0 0.0
        %206 = vmatprep.subr.mxu0 0.0
        %207 = vmatpush1.msra.mxu0 0.0
        %208 = vmatprep.subr.mxu0 0.0
        %209 = vmatpush1.msra.mxu0 0.0
        %210 = vmatprep.subr.mxu0 0.0
        %211 = vmatpush1.msra.mxu0 0.0
        %212 = vmatprep.subr.mxu0 0.0
        %213 = vmatpush1.msra.mxu0 0.0
        %214 = vmatprep.subr.mxu0 0.0
        %215 = vmatpush1.msra.mxu0 0.0
        %216 = vmatprep.subr.mxu0 0.0
        %217 = vmatpush1.msra.mxu0 0.0
        %218 = vmatprep.subr.mxu0 0.0
        %219 = vmatpush1.msra.mxu0 0.0
        %220 = vmatprep.subr.mxu0 0.0
        %221 = vmatpush1.msra.mxu0 0.0
        %222 = vmatprep.mubr.f32.mxu0 0.0
        %223 = vmatmul.mubr.f32.gmra.mrb[0].mxu0 %v153
        %v224 = vpop.f32.mrb[0].mxu0
        %v225 = vadd.f32 0.0, %v224
        %v226 = vpop.f32.mrb[0].mxu0
        %v227 = vadd.f32 0.0, %v226
        %228 = vmatprep.mubr.f32.mxu0 0.0
        %229 = vmatmul.mubr.f32.gmra.mrb[0].mxu0 %v156
        %v230 = vpop.f32.mrb[0].mxu0
        %v231 = vadd.f32 0.0, %v230
        %v232 = vpop.f32.mrb[0].mxu0
        %v233 = vadd.f32 0.0, %v232
        %234 = vdwg.mxu0
        %v235 = vand.u32 2147483647, %v225
        %vm236 = vcmp.le.f32.partialorder %v235, 0.7853982
        %vm237 = vcmp.lt.s32.totalorder %v225, 0
        %v238 = vand.u32 %v225, 2139095040
        %v239 = vshrl.u32 %v238, 23
        %v240 = vsub.s32 %v239, 127
        %v241 = vand.u32 2147483647, %v225
        %v242 = vand.u32 %v241, 8388607
        %v243 = vor.u32 %v242, 8388608
        %v244 = vsub.s32 0, %v243
        %v245 = vadd.s32 %v240, 1
        %vm246 = vcmp.gt.s32.totalorder %v245, 0
        %v247 = vsel %vm246, %v245, 0
        %v248 = vshrl.u32 %v247, 5
        %v249 = vand.u32 %v247, 31
        %v250 = vsub.s32 32, %v249
        %v251 = vshrl.u32 683565275, %v250
        %v252 = vshll.u32 683565275, %v249
        %v253 = vshrl.u32 2475754826, %v250
        %v254 = vor.u32 %v252, %v253
        %v255 = vshll.u32 2475754826, %v249
        %v256 = vshrl.u32 2131351028, %v250
        %v257 = vor.u32 %v255, %v256
        %v258 = vshll.u32 2131351028, %v249
        %v259 = vshrl.u32 2102212464, %v250
        %v260 = vor.u32 %v258, %v259
        %v261 = vshll.u32 2102212464, %v249
        %v262 = vshrl.u32 920167782, %v250
        %v263 = vor.u32 %v261, %v262
        %v264 = vshll.u32 920167782, %v249
        %v265 = vshrl.u32 1326507024, %v250
        %v266 = vor.u32 %v264, %v265
        %vm267 = vcmp.lt.s32.totalorder %v248, 1
        %vm268 = vcmp.lt.s32.totalorder %v248, 2
        %vm269 = vcmp.lt.s32.totalorder %v248, 3
        %vm270 = vcmp.lt.s32.totalorder %v248, 4
        %v271 = vsel %vm267, %v251, %v254
        %v272 = vsel %vm270, %v260, 2102212464
        %v273 = vsel %vm269, %v257, %v272
        %v274 = vsel %vm268, %v271, %v273
        %v275 = vsel %vm267, %v254, %v257
        %v276 = vsel %vm270, %v263, 920167782
        %v277 = vsel %vm269, %v260, %v276
        %v278 = vsel %vm268, %v275, %v277
        %v279 = vsel %vm267, %v257, %v260
        %v280 = vsel %vm270, %v266, 1326507024
        %v281 = vsel %vm269, %v263, %v280
        %v282 = vsel %vm268, %v279, %v281
        %v283 = vshll.u32 %v243, 8
        %v284 = vmul.u32.u64.compose %v283, %v282
        %v285 = vextract.low.u32 %v284
        %v286 = vextract.high.u32 %v284
        %v287 = vmul.u32.u64.compose %v283, %v278
        %v288 = vextract.low.u32 %v287
        %v289 = vextract.high.u32 %v287
        %v290 = vmul.u32 %v283, %v274
        %v291 = vadd.s32 %v286, %v288
        %vm292 = vc.u32 %v286, %v288
        %v293 = vadd.s32 %v289, 1
        %v294 = vsel %vm292, %v293, %v289
        %v295 = vadd.s32 %v290, %v294
        %v296 = vadd.s32 %v295, 536870912
        %v297 = vshrl.u32 %v296, 30
        %v298 = vshll.u32 %v297, 30
        %v299 = vsub.s32 %v295, %v298
        %vm300 = vcmp.lt.s32.totalorder %v299, 0
        %v301 = vsub.s32 0, %v299
        %v302 = vsel %vm300, %v301, %v299
        %v303 = vclz %v302
        %v304 = vsub.s32 %v303, 2
        %vm305 = vcmp.gt.s32.totalorder 0, %v304
        %v306 = vsel %vm305, 0, %v304
        %v307 = vsub.s32 32, %v306
        %v308 = vshll.u32 %v299, %v306
        %v309 = vshrl.u32 %v291, %v307
        %v310 = vor.u32 %v308, %v309
        %v311 = vsub.s32 4294967266, %v306
        %v312 = vadd.s32 %v311, 127
        %v313 = vshll.u32 %v312, 23
        %v314 = vor.u32 4788187, %v313
        %v315 = vand.u32 2147483647, %v314
        %v317 = vcvt.s32.f32 %v310
        %v318 = vmul.f32 %v317, %v315
        %v319 = vxor.u32 %v318, 2147483648
        %v320 = vsel %vm237, %v319, %v318
        %v321 = vsub.s32 4, %v297
        %v322 = vsel %vm237, %v321, %v297
        %v323 = vsel %vm236, %v225, %v320
        %v324 = vsel %vm236, 0, %v322
        %v325 = vcosq.f32.pop %v323
        %v326 = vsinq.f32.pop %v323
        %vm327 = vweird.f32 %v225
        %v328 = vadd.s32 %v324, 3
        %v329 = vand.u32 %v328, 3
        %vm330 = vcmp.lt.s32.totalorder %v329, 2
        %vm331 = vcmp.eq.s32.totalorder %v329, 0
        %v332 = vxor.u32 %v326, 2147483648
        %v333 = vsel %vm331, %v325, %v332
        %vm334 = vcmp.eq.s32.totalorder %v329, 2
        %v335 = vxor.u32 %v325, 2147483648
        %v336 = vsel %vm334, %v335, %v326
        %v337 = vsel %vm330, %v333, %v336
        %v338 = vsel %vm327, nan, %v337
        %v339 = vand.u32 2147483647, %v231
        %vm340 = vcmp.le.f32.partialorder %v339, 0.7853982
        %vm341 = vcmp.lt.s32.totalorder %v231, 0
        %v342 = vand.u32 %v231, 2139095040
        %v343 = vshrl.u32 %v342, 23
        %v344 = vsub.s32 %v343, 127
        %v345 = vand.u32 2147483647, %v231
        %v346 = vand.u32 %v345, 8388607
        %v347 = vor.u32 %v346, 8388608
        %v348 = vsub.s32 0, %v347
        %v349 = vadd.s32 %v344, 1
        %vm350 = vcmp.gt.s32.totalorder %v349, 0
        %v351 = vsel %vm350, %v349, 0
        %v352 = vshrl.u32 %v351, 5
        %v353 = vand.u32 %v351, 31
        %v354 = vsub.s32 32, %v353
        %v355 = vshrl.u32 683565275, %v354
        %v356 = vshll.u32 683565275, %v353
        %v357 = vshrl.u32 2475754826, %v354
        %v358 = vor.u32 %v356, %v357
        %v359 = vshll.u32 2475754826, %v353
        %v360 = vshrl.u32 2131351028, %v354
        %v361 = vor.u32 %v359, %v360
        %v362 = vshll.u32 2131351028, %v353
        %v363 = vshrl.u32 2102212464, %v354
        %v364 = vor.u32 %v362, %v363
        %v365 = vshll.u32 2102212464, %v353
        %v366 = vshrl.u32 920167782, %v354
        %v367 = vor.u32 %v365, %v366
        %v368 = vshll.u32 920167782, %v353
        %v369 = vshrl.u32 1326507024, %v354
        %v370 = vor.u32 %v368, %v369
        %vm371 = vcmp.lt.s32.totalorder %v352, 1
        %vm372 = vcmp.lt.s32.totalorder %v352, 2
        %vm373 = vcmp.lt.s32.totalorder %v352, 3
        %vm374 = vcmp.lt.s32.totalorder %v352, 4
        %v375 = vsel %vm371, %v355, %v358
        %v376 = vsel %vm374, %v364, 2102212464
        %v377 = vsel %vm373, %v361, %v376
        %v378 = vsel %vm372, %v375, %v377
        %v379 = vsel %vm371, %v358, %v361
        %v380 = vsel %vm374, %v367, 920167782
        %v381 = vsel %vm373, %v364, %v380
        %v382 = vsel %vm372, %v379, %v381
        %v383 = vsel %vm371, %v361, %v364
        %v384 = vsel %vm374, %v370, 1326507024
        %v385 = vsel %vm373, %v367, %v384
        %v386 = vsel %vm372, %v383, %v385
        %v387 = vshll.u32 %v347, 8
        %v388 = vmul.u32.u64.compose %v387, %v386
        %v389 = vextract.low.u32 %v388
        %v390 = vextract.high.u32 %v388
        %v391 = vmul.u32.u64.compose %v387, %v382
        %v392 = vextract.low.u32 %v391
        %v393 = vextract.high.u32 %v391
        %v394 = vmul.u32 %v387, %v378
        %v395 = vadd.s32 %v390, %v392
        %vm396 = vc.u32 %v390, %v392
        %v397 = vadd.s32 %v393, 1
        %v398 = vsel %vm396, %v397, %v393
        %v399 = vadd.s32 %v394, %v398
        %v400 = vadd.s32 %v399, 536870912
        %v401 = vshrl.u32 %v400, 30
        %v402 = vshll.u32 %v401, 30
        %v403 = vsub.s32 %v399, %v402
        %vm404 = vcmp.lt.s32.totalorder %v403, 0
        %v405 = vsub.s32 0, %v403
        %v406 = vsel %vm404, %v405, %v403
        %v407 = vclz %v406
        %v408 = vsub.s32 %v407, 2
        %vm409 = vcmp.gt.s32.totalorder 0, %v408
        %v410 = vsel %vm409, 0, %v408
        %v411 = vsub.s32 32, %v410
        %v412 = vshll.u32 %v403, %v410
        %v413 = vshrl.u32 %v395, %v411
        %v414 = vor.u32 %v412, %v413
        %v415 = vsub.s32 4294967266, %v410
        %v416 = vadd.s32 %v415, 127
        %v417 = vshll.u32 %v416, 23
        %v418 = vor.u32 4788187, %v417
        %v419 = vand.u32 2147483647, %v418
        %v421 = vcvt.s32.f32 %v414
        %v422 = vmul.f32 %v421, %v419
        %v423 = vxor.u32 %v422, 2147483648
        %v424 = vsel %vm341, %v423, %v422
        %v425 = vsub.s32 4, %v401
        %v426 = vsel %vm341, %v425, %v401
        %v427 = vsel %vm340, %v231, %v424
        %v428 = vsel %vm340, 0, %v426
        %v429 = vcosq.f32.pop %v427
        %v430 = vsinq.f32.pop %v427
        %vm431 = vweird.f32 %v231
        %v432 = vadd.s32 %v428, 3
        %v433 = vand.u32 %v432, 3
        %vm434 = vcmp.lt.s32.totalorder %v433, 2
        %vm435 = vcmp.eq.s32.totalorder %v433, 0
        %v436 = vxor.u32 %v430, 2147483648
        %v437 = vsel %vm435, %v429, %v436
        %vm438 = vcmp.eq.s32.totalorder %v433, 2
        %v439 = vxor.u32 %v429, 2147483648
        %v440 = vsel %vm438, %v439, %v430
        %v441 = vsel %vm434, %v437, %v440
        %v442 = vsel %vm431, nan, %v441
        %v443 = vmul.f32 %v227, 1.442695
        %v444 = vpow.pop %v443
        %v445 = vmul.f32 %v233, 1.442695
        %v446 = vpow.pop %v445
        %v447 = vmul.f32 %v338, %v444
        %v448 = vmul.f32 %v442, %v446
        %449 = vst [vmem:[%s137] sm:$0xff] %v447
        %450 = vst [vmem:[%s137 + $0x8] sm:$0xff] %v448
        %s451 = sand.u32 %s71, 1
        %s452 = scalar_lea.sflag [#allocation3], %s451
        %s453 = sand.u32 %s71, 1
        %s454 = smul.addr %s453, 16
        %s455 = scalar_lea.vmem [#allocation2], %s454
        // Predicated region
        $region29: #{_gabor_layer_forward_flat.1} parent=27 // pred_check
          %p456 = pneg %p81
        $region30: #{_gabor_layer_forward_flat.1} parent=27 // pred_check_branch
          %458 = sbr.rel (%p456) target = $region32
        $region31: #{_gabor_layer_forward_flat.1} parent=27 // pred_region
          %s459 = smul.u32 2, %s16
          %s461 = ssub.s32 256, 256
          %462 = vsyncadd %s452, %s461
          %s463 = smul.addr %s459, 128
          %s464 = scalar_lea.hbm %s2, %s463
          %s465 = sshll.u32 %s455, 4
          %s466 = int_to_ptr.vmem [resolvable:$true] %s465
          %471 = dma.vmem_to_hbm [thread:$0]  %s466, 256, %s464, %s452, 128, 128, 8
        $region32: #{_gabor_layer_forward_flat.1} parent=27 // pred_fallthru
          _
      $region28: #{_gabor_layer_forward_flat.1} parent=5 // pred_fallthru
        _
      %p472 = scmp.le.s32.totalorder 2, %s11
      // Predicated region
      $region33: #{_gabor_layer_forward_flat.1} parent=5 // pred_check
        %p473 = pneg %p472
      $region34: #{_gabor_layer_forward_flat.1} parent=5 // pred_check_branch
        %475 = sbr.rel (%p473) target = $region36
      $region35: #{_gabor_layer_forward_flat.1} parent=5 // pred_region
        %s476 = ssub.s32 %s11, 2
        // Predicated region
        $region37: #{_gabor_layer_forward_flat.1} parent=35 // pred_check
          %p477 = pneg %p87
        $region38: #{_gabor_layer_forward_flat.1} parent=35 // pred_check_branch
          %479 = sbr.rel (%p477) target = $region40
        $region39: #{_gabor_layer_forward_flat.1} parent=35 // pred_region
          %s480 = sand.u32 %s72, 1
          %s481 = scalar_lea.sflag [#allocation3], %s480
          %s482 = sand.u32 %s72, 1
          %s483 = smul.addr %s482, 16
          %s484 = scalar_lea.vmem [#allocation2], %s483
          %485 = dma.done %s481, 256
        $region40: #{_gabor_layer_forward_flat.1} parent=35 // pred_fallthru
          _
      $region36: #{_gabor_layer_forward_flat.1} parent=5 // pred_fallthru
        _
    $region6: #{_gabor_layer_forward_flat.1} parent=1 // loop_footer
      %s15 = sadd.s32 1, %s11
    $region7: #{_gabor_layer_forward_flat.1} parent=1 // loop_footer_branch
      %10 = sbr.rel target = $region3
    $region8: #{_gabor_layer_forward_flat.1} parent=1 // loop_exit
      _
    %486 = vsyncpa [#allocation3], 1
    %s487 = scalar_lea.sflag [#allocation3], 1
    %488 = vsyncpa %s487, 1

</llo_original>
